<compile_context>
chip_gen: v5e
topology: v5e:2x2
jax: 0.10.0
libtpu: 0.0.40
codegen_flags: <defaults>
</compile_context>

<pallas_src>
import jax
import jax.numpy as jnp
from jax import lax
from jax.experimental import pallas as pl
from jax.experimental.pallas import tpu as pltpu


LANE = 128


def _round_up(x, m):
    return (x + m - 1) // m * m


def cbow_kernel(idx_ref, row_ref, w_ref, b_ref, out_ref, acc_ref):
    # idx_ref : (B, L)       int32  SMEM   scalar-prefetch token indices
    # row_ref : (1, 1, E)    f32    VMEM   gathered embedding row table[idx[b,l]]
    # w_ref   : (Vpad, E)    f32    VMEM   linear weight (native PyTorch layout)
    # b_ref   : (1, Vpad)    f32    VMEM   linear bias (padded cols = -1e30)
    # out_ref : (1, 1, Vpad) f32    VMEM   log-softmax row for batch element b
    # acc_ref : (1, E)       f32    VMEM   running sum of context embeddings
    l = pl.program_id(1)

    @pl.when(l == 0)
    def _():
        acc_ref[...] = jnp.zeros_like(acc_ref)

    # sum over the context dimension (one gathered row per grid step)
    acc_ref[...] += row_ref[0]

    @pl.when(l == pl.num_programs(1) - 1)
    def _():
        # Linear: summed @ W^T + b, expressed by contracting dim 1 of both
        # operands (no transposed copy of the weight anywhere).
        logits = lax.dot_general(
            acc_ref[...], w_ref[...],
            dimension_numbers=(((1,), (1,)), ((), ())),
            preferred_element_type=jnp.float32) + b_ref[...]          # (1, Vpad)
        # Numerically stable log_softmax over the vocab axis.  Padded vocab
        # columns carry bias = -1e30, so exp(shifted) underflows to 0 there.
        m = jnp.max(logits, axis=1, keepdims=True)
        shifted = logits - m
        lse = jnp.log(jnp.sum(jnp.exp(shifted), axis=1, keepdims=True))
        out_ref[0] = shifted - lse


def cbow_forward(idx, table, weight, bias):
    """idx: (B, L) int32; table: (V, E) f32; weight: (V, E) f32; bias: (V,) f32."""
    B, L = idx.shape
    V, E = table.shape
    Vpad = _round_up(V, LANE)

    # Lane-dense vocab padding for the linear layer.  Zero weight rows and
    # -1e30 bias entries make the padded logits vanish under softmax.
    w_pad = jnp.zeros((Vpad, E), jnp.float32).at[:V].set(weight.astype(jnp.float32))
    b_pad = jnp.full((1, Vpad), -1e30, jnp.float32).at[0, :V].set(bias.astype(jnp.float32))
    # Add a unit dim so the gathered (1, 1, E) block keeps its last two dims
    # equal to the full array dims (TPU block-shape rule).
    table3 = table.astype(jnp.float32).reshape(V, 1, E)

    grid_spec = pltpu.PrefetchScalarGridSpec(
        num_scalar_prefetch=1,            # idx -> SMEM, visible to index_maps
        grid=(B, L),                      # (batch element, context position)
        in_specs=[
            # Data-dependent gather: DMA embedding row idx[b, l] per step.
            pl.BlockSpec((1, 1, E), lambda b, l, idx: (idx[b, l], 0, 0)),
            # Weight / bias resident in VMEM across the whole grid.
            pl.BlockSpec((Vpad, E), lambda b, l, idx: (0, 0)),
            pl.BlockSpec((1, Vpad), lambda b, l, idx: (0, 0)),
        ],
        out_specs=pl.BlockSpec((1, 1, Vpad), lambda b, l, idx: (b, 0, 0)),
        scratch_shapes=[pltpu.VMEM((1, E), jnp.float32)],
    )

    out = pl.pallas_call(
        cbow_kernel,
        out_shape=jax.ShapeDtypeStruct((B, 1, Vpad), jnp.float32),
        grid_spec=grid_spec,
        compiler_params=pltpu.CompilerParams(
            dimension_semantics=("parallel", "arbitrary")),
    )(idx.astype(jnp.int32), table3, w_pad, b_pad)

    return out[:, 0, :V]


def cbow_reference(idx, table, weight, bias):
    emb = jnp.take(table, idx, axis=0)          # (B, L, E)
    summed = jnp.sum(emb, axis=1)               # (B, E)
    logits = summed @ weight.T + bias           # (B, V)
    return jax.nn.log_softmax(logits, axis=1)


if __name__ == "__main__":
    # Small shapes consistent with the module: vocab=64, embed_dim=32,
    # batch=4, context window=6.
    V, E = 64, 32
    B, L = 4, 6

    key = jax.random.PRNGKey(0)
    k_idx, k_tab, k_w, k_b = jax.random.split(key, 4)

    idx = jax.random.randint(k_idx, (B, L), 0, V, dtype=jnp.int32)
    # Deterministic parameter init (nn.Embedding ~ N(0,1); nn.Linear ~ uniform)
    table = jax.random.normal(k_tab, (V, E), dtype=jnp.float32)
    bound = 1.0 / (E ** 0.5)
    weight = jax.random.uniform(k_w, (V, E), minval=-bound, maxval=bound,
                                dtype=jnp.float32)
    bias = jax.random.uniform(k_b, (V,), minval=-bound, maxval=bound,
                              dtype=jnp.float32)

    out = cbow_forward(idx, table, weight, bias)
    out = jax.block_until_ready(out)

    ref = cbow_reference(idx, table, weight, bias)
    assert out.shape == (B, V)
    assert jnp.allclose(out, ref, atol=1e-4, rtol=1e-4)

    print("KERNEL_OK")
</pallas_src>

<mosaic_0001>
module attributes {stable_mosaic.version = 11 : i64} {
  func.func @cbow_kernel(%arg0: i32, %arg1: i32, %arg2: memref<4x6xi32, #tpu.memory_space<smem>>, %arg3: memref<1x1x32xf32, #tpu.memory_space<vmem>>, %arg4: memref<128x32xf32, #tpu.memory_space<vmem>>, %arg5: memref<1x128xf32, #tpu.memory_space<vmem>>, %arg6: memref<1x1x128xf32, #tpu.memory_space<vmem>>, %arg7: memref<1x32xf32, #tpu.memory_space<vmem>>) attributes {dimension_semantics = [#tpu.dimension_semantics<parallel>, #tpu.dimension_semantics<arbitrary>], iteration_bounds = array<i64: 4, 6>, scalar_prefetch = 1 : i64, scratch_operands = 1 : i64, tpu.core_type = #tpu.core_type<tc>, window_params = [{transform_indices = @transform_0, window_bounds = array<i64: 1, 1, 32>}, {pipeline_mode = #tpu.pipeline_mode<synchronous>, transform_indices = @transform_1, window_bounds = array<i64: 128, 32>}, {pipeline_mode = #tpu.pipeline_mode<synchronous>, transform_indices = @transform_2, window_bounds = array<i64: 1, 128>}, {transform_indices = @transform_3, window_bounds = array<i64: 1, 1, 128>}]} {
    %c0_i32 = arith.constant 0 : i32
    %0 = arith.cmpi eq, %arg1, %c0_i32 : i32
    %1 = arith.extui %0 : i1 to i32
    %c0_i32_0 = arith.constant 0 : i32
    %2 = arith.cmpi ne, %1, %c0_i32_0 : i32
    scf.if %2 {
      %cst = arith.constant 0.000000e+00 : f32
      %11 = vector.broadcast %cst : f32 to vector<1x32xf32>
      %c0_8 = arith.constant 0 : index
      %c0_9 = arith.constant 0 : index
      %12 = vector.load %arg7[%c0_8, %c0_9] : memref<1x32xf32, #tpu.memory_space<vmem>>, vector<1x32xf32>
      tpu.vector_store %arg7[%c0_8, %c0_9], %11 {strides = array<i32>} : memref<1x32xf32, #tpu.memory_space<vmem>>, vector<1x32xf32>,
    } else {
    }
    %c0 = arith.constant 0 : index
    %c0_1 = arith.constant 0 : index
    %3 = vector.load %arg7[%c0, %c0_1] : memref<1x32xf32, #tpu.memory_space<vmem>>, vector<1x32xf32>
    %c0_2 = arith.constant 0 : index
    %c0_3 = arith.constant 0 : index
    %c0_4 = arith.constant 0 : index
    %4 = vector.load %arg3[%c0_2, %c0_3, %c0_4] : memref<1x1x32xf32, #tpu.memory_space<vmem>>, vector<1x1x32xf32>
    %5 = vector.shape_cast %4 : vector<1x1x32xf32> to vector<1x32xf32>
    %6 = arith.addf %3, %5 : vector<1x32xf32>
    %c0_5 = arith.constant 0 : index
    %c0_6 = arith.constant 0 : index
    %7 = vector.load %arg7[%c0_5, %c0_6] : memref<1x32xf32, #tpu.memory_space<vmem>>, vector<1x32xf32>
    tpu.vector_store %arg7[%c0_5, %c0_6], %6 {strides = array<i32>} : memref<1x32xf32, #tpu.memory_space<vmem>>, vector<1x32xf32>,
    %c5_i32 = arith.constant 5 : i32
    %8 = arith.cmpi eq, %arg1, %c5_i32 : i32
    %9 = arith.extui %8 : i1 to i32
    %c0_i32_7 = arith.constant 0 : i32
    %10 = arith.cmpi ne, %9, %c0_i32_7 : i32
    scf.if %10 {
      %c0_8 = arith.constant 0 : index
      %c0_9 = arith.constant 0 : index
      %11 = vector.load %arg7[%c0_8, %c0_9] : memref<1x32xf32, #tpu.memory_space<vmem>>, vector<1x32xf32>
      %c0_10 = arith.constant 0 : index
      %c0_11 = arith.constant 0 : index
      %12 = vector.load %arg4[%c0_10, %c0_11] : memref<128x32xf32, #tpu.memory_space<vmem>>, vector<128x32xf32>
      %cst = arith.constant dense<0.000000e+00> : vector<1x128xf32>
      %13 = tpu.matmul %11, %12, %cst {dimension_numbers = #tpu.dot_dimension_numbers<[1], [1], [0], [0], [0, 0, 1, 0], [], []>} : vector<1x32xf32>, vector<128x32xf32>, vector<1x128xf32> -> vector<1x128xf32>
      %c0_12 = arith.constant 0 : index
      %c0_13 = arith.constant 0 : index
      %14 = vector.load %arg5[%c0_12, %c0_13] : memref<1x128xf32, #tpu.memory_space<vmem>>, vector<1x128xf32>
      %15 = arith.addf %13, %14 : vector<1x128xf32>
      %cst_14 = arith.constant dense<0xFF800000> : vector<1xf32>
      %16 = vector.multi_reduction <maximumf>, %15, %cst_14 [1] : vector<1x128xf32> to vector<1xf32>
      %17 = vector.shape_cast %16 : vector<1xf32> to vector<1x1xf32>
      %18 = vector.broadcast %17 : vector<1x1xf32> to vector<1x128xf32>
      %19 = arith.subf %15, %18 : vector<1x128xf32>
      %20 = math.exp %19 : vector<1x128xf32>
      %cst_15 = arith.constant dense<0.000000e+00> : vector<1xf32>
      %21 = vector.multi_reduction <add>, %20, %cst_15 [1] : vector<1x128xf32> to vector<1xf32>
      %22 = vector.shape_cast %21 : vector<1xf32> to vector<1x1xf32>
      %23 = math.log %22 : vector<1x1xf32>
      %24 = vector.broadcast %23 : vector<1x1xf32> to vector<1x128xf32>
      %25 = arith.subf %19, %24 : vector<1x128xf32>
      %c0_16 = arith.constant 0 : index
      %c0_17 = arith.constant 0 : index
      %c0_18 = arith.constant 0 : index
      %26 = vector.load %arg6[%c0_16, %c0_17, %c0_18] : memref<1x1x128xf32, #tpu.memory_space<vmem>>, vector<1x1x128xf32>
      %27 = vector.shape_cast %26 : vector<1x1x128xf32> to vector<1x128xf32>
      %28 = vector.shape_cast %25 : vector<1x128xf32> to vector<1x1x128xf32>
      tpu.vector_store %arg6[%c0_16, %c0_17, %c0_18], %28 {strides = array<i32>} : memref<1x1x128xf32, #tpu.memory_space<vmem>>, vector<1x1x128xf32>,
    } else {
    }
    return
  }
  func.func @transform_0(%arg0: i32, %arg1: i32, %arg2: memref<4x6xi32, #tpu.memory_space<smem>>) -> (i32, i32, i32) {
    %0 = arith.index_cast %arg0 : i32 to index
    %1 = arith.index_cast %arg1 : i32 to index
    %2 = memref.load %arg2[%0, %1] : memref<4x6xi32, #tpu.memory_space<smem>>
    %c0_i32 = arith.constant 0 : i32
    %c0_i32_0 = arith.constant 0 : i32
    %c0_i32_1 = arith.constant 0 : i32
    return %2, %c0_i32, %c0_i32_0 : i32, i32, i32
  }
  func.func @transform_1(%arg0: i32, %arg1: i32, %arg2: memref<4x6xi32, #tpu.memory_space<smem>>) -> (i32, i32) {
    %c0_i32 = arith.constant 0 : i32
    %c0_i32_0 = arith.constant 0 : i32
    %c0_i32_1 = arith.constant 0 : i32
    return %c0_i32, %c0_i32_0 : i32, i32
  }
  func.func @transform_2(%arg0: i32, %arg1: i32, %arg2: memref<4x6xi32, #tpu.memory_space<smem>>) -> (i32, i32) {
    %c0_i32 = arith.constant 0 : i32
    %c0_i32_0 = arith.constant 0 : i32
    %c0_i32_1 = arith.constant 0 : i32
    return %c0_i32, %c0_i32_0 : i32, i32
  }
  func.func @transform_3(%arg0: i32, %arg1: i32, %arg2: memref<4x6xi32, #tpu.memory_space<smem>>) -> (i32, i32, i32) {
    %c0_i32 = arith.constant 0 : i32
    %c0_i32_0 = arith.constant 0 : i32
    %c0_i32_1 = arith.constant 0 : i32
    return %arg0, %c0_i32, %c0_i32_0 : i32, i32, i32
  }
}

</mosaic_0001>

<llo_original>
// kernel: tpu_custom_call.1
$region0: #{tpu_custom_call.1}
  #allocation0 [shape = 'u32[]', space=smem, size = 0x4, offset = 0x4, fixed_abs, tag = 'smem constant byte address 0x4 - core index']
  #allocation1 [shape = 'u32[72,128]{1,0:T(1,128)}', space=vmem, size = 0x9000, scoped, tag = 'internal scratch']
  #allocation2 [shape = 'f32[1,32]{1,0:T(1,128)}', space=vmem, size = 0x200, scoped, tag = 'scratch operand']
  #allocation3 [shape = 's32[1]{0}', space=sflag, size = 0x4, scoped, tag = 'scoped memory for tpu_custom_call.1']
  #allocation4 [shape = 'u8[2048]{0}', space=smem, size = 0x800, scoped, tag = 'prefetched SMEM operand 0']
  %s0 = inlined_call_operand.vmem [shape: s32[4,6], index: 0, kind: input, shape index: {}]
  %s1 = inlined_call_operand.vmem [shape: f32[64,1,32], index: 1, kind: input, shape index: {}]
  %s2 = inlined_call_operand.vmem [shape: f32[128,32], index: 2, kind: input, shape index: {}]
  %s3 = inlined_call_operand.vmem [shape: f32[1,128], index: 3, kind: input, shape index: {}]
  %s4 = inlined_call_operand.hbm [shape: f32[4,1,128], index: 4, kind: output, shape index: {}]
  %s5 = sld [smem:[#allocation0]]
  $region53: #{tpu_custom_call.1} parent=0
    _
  %s7 = ssub.s32 1, %s5
  %s8 = scalar_select 0, %s7, %s5
  %s10 = sshll.u32 %s0, 4
  %s11 = int_to_ptr.vmem [resolvable:$true] %s10
  %13 = dma.vmem_to_smem %s11, 64, [#allocation4], [#allocation3]
  %15 = dma.done [#allocation3], 64
  %16 = sfence
  $region1: #{tpu_custom_call.1} parent=0
    #allocation5 [shape = 'u8[1024]{0}', space=vmem, size = 0x400, scoped, tag = 'output window, operand 0']
    #allocation6 [shape = 's32[2]{0}', space=sflag, size = 0x8, scoped, tag = 'scoped memory for tpu_custom_call.1']
    %17 = vsyncpa [#allocation6], 0
    %s18 = scalar_lea.sflag [#allocation6], 1
    %19 = vsyncpa %s18, 0
    loop: start=0, step=1, limit=26
    $region2: #{tpu_custom_call.1} parent=1 // loop_pre_header
      _
    $region3: #{tpu_custom_call.1} parent=1 // loop_header
      %s21 = sphi 0, %s25
      %p22 = scmp.ge.s32.totalorder %s21, 26
      %s28 = sphi 0, %s40
      %s29 = sphi 0, %s36
      %s30 = sphi 0, %s28
      %s31 = sphi 0, %s29
      %s32 = sphi 0, %s30
      %s33 = sphi 0, %s31
      %s59 = sphi 0, %s61
      %s62 = sphi 0, %s59
      %s63 = sphi 0, %s62
      %s79 = sphi 0, %s63
      %s83 = sphi 0, %s83
      %s85 = sphi 0, %s83
      %s86 = sphi 0, %s85
      %s100 = sphi 0, %s86
      %s104 = sphi 0, %s104
      %s106 = sphi 0, %s104
      %s107 = sphi 0, %s106
      %s121 = sphi 0, %s107
      %s127 = sphi 0, %s129
      %s130 = sphi 0, %s127
      %s131 = sphi 0, %s130
      %s147 = sphi 0, %s131
    $region4: #{tpu_custom_call.1} parent=1 // loop_header_branch
      %24 = sbr.rel (%p22) target = $region8
    $region5: #{tpu_custom_call.1} parent=1 // loop_body
      %s26 = ssub.s32 %s21, 1
      %s27 = ssub.s32 %s21, 2
      %s34 = sadd.s32 1, %s29
      %p35 = scmp.ge.s32.totalorder %s34, 6
      %s36 = scalar_select %p35, 0, %s34
      %s37 = sadd.s32 1, %s28
      %s38 = scalar_select %p35, %s37, %s28
      %p39 = scmp.ge.s32.totalorder %s38, 4
      %s40 = scalar_select %p39, 0, %s38
      %s41 = sshra.s32 %s29, 7
      %s42 = sand.u32 %s29, 127
      %s43 = sadd.s32 %s41, %s28
      %s44 = smul.u32 %s43, 128
      %s45 = sshra.s32 %s29, 7
      %s46 = sand.u32 %s29, 127
      %s47 = sadd.s32 %s44, %s46
      %s48 = sld [smem:[#allocation4 + %s47]]
      %s49 = sshra.s32 %s36, 7
      %s50 = sand.u32 %s36, 127
      %s51 = sadd.s32 %s49, %s40
      %s52 = smul.u32 %s51, 128
      %s53 = sshra.s32 %s36, 7
      %s54 = sand.u32 %s36, 127
      %s55 = sadd.s32 %s52, %s54
      %s56 = sld [smem:[#allocation4 + %s55]]
      %s57 = ssub.s32 %s48, %s56
      %p58 = scmp.eq.s32.totalorder %s57, 0
      %s60 = sadd.s32 %s59, 1
      %s61 = scalar_select %p58, %s59, %s60
      %p64 = pneg %p58
      %p65 = scmp.eq.s32.totalorder %s21, 23
      %p66 = por %p64, %p65
      %p67 = scmp.ne.s32.totalorder %s59, %s62
      %p68 = scmp.eq.s32.totalorder %s21, 0
      %p69 = por %p67, %p68
      %p70 = scmp.ne.s32.totalorder %s59, %s62
      %p71 = scmp.eq.s32.totalorder %s26, 23
      %p72 = por %p70, %p71
      %p73 = scmp.ne.s32.totalorder %s62, %s63
      %p74 = scmp.eq.s32.totalorder %s26, 0
      %p75 = por %p73, %p74
      %p76 = scmp.ne.s32.totalorder %s62, %s63
      %p77 = scmp.eq.s32.totalorder %s27, 23
      %p78 = por %p76, %p77
      %p80 = scmp.ne.s32.totalorder %s63, %s79
      %p81 = scmp.eq.s32.totalorder %s27, 0
      %p82 = por %p80, %p81
      %s84 = sadd.s32 %s83, 1
      %p87 = scmp.eq.s32.totalorder %s21, 23
      %p88 = scmp.ne.s32.totalorder %s83, %s85
      %p89 = scmp.eq.s32.totalorder %s21, 0
      %p90 = por %p88, %p89
      %p91 = scmp.ne.s32.totalorder %s83, %s85
      %p92 = scmp.eq.s32.totalorder %s26, 23
      %p93 = por %p91, %p92
      %p94 = scmp.ne.s32.totalorder %s85, %s86
      %p95 = scmp.eq.s32.totalorder %s26, 0
      %p96 = por %p94, %p95
      %p97 = scmp.ne.s32.totalorder %s85, %s86
      %p98 = scmp.eq.s32.totalorder %s27, 23
      %p99 = por %p97, %p98
      %p101 = scmp.ne.s32.totalorder %s86, %s100
      %p102 = scmp.eq.s32.totalorder %s27, 0
      %p103 = por %p101, %p102
      %s105 = sadd.s32 %s104, 1
      %p108 = scmp.eq.s32.totalorder %s21, 23
      %p109 = scmp.ne.s32.totalorder %s104, %s106
      %p110 = scmp.eq.s32.totalorder %s21, 0
      %p111 = por %p109, %p110
      %p112 = scmp.ne.s32.totalorder %s104, %s106
      %p113 = scmp.eq.s32.totalorder %s26, 23
      %p114 = por %p112, %p113
      %p115 = scmp.ne.s32.totalorder %s106, %s107
      %p116 = scmp.eq.s32.totalorder %s26, 0
      %p117 = por %p115, %p116
      %p118 = scmp.ne.s32.totalorder %s106, %s107
      %p119 = scmp.eq.s32.totalorder %s27, 23
      %p120 = por %p118, %p119
      %p122 = scmp.ne.s32.totalorder %s107, %s121
      %p123 = scmp.eq.s32.totalorder %s27, 0
      %p124 = por %p122, %p123
      %s125 = ssub.s32 %s28, %s40
      %p126 = scmp.eq.s32.totalorder %s125, 0
      %s128 = sadd.s32 %s127, 1
      %s129 = scalar_select %p126, %s127, %s128
      %p132 = pneg %p126
      %p133 = scmp.eq.s32.totalorder %s21, 23
      %p134 = por %p132, %p133
      %p135 = scmp.ne.s32.totalorder %s127, %s130
      %p136 = scmp.eq.s32.totalorder %s21, 0
      %p137 = por %p135, %p136
      %p138 = scmp.ne.s32.totalorder %s127, %s130
      %p139 = scmp.eq.s32.totalorder %s26, 23
      %p140 = por %p138, %p139
      %p141 = scmp.ne.s32.totalorder %s130, %s131
      %p142 = scmp.eq.s32.totalorder %s26, 0
      %p143 = por %p141, %p142
      %p144 = scmp.ne.s32.totalorder %s130, %s131
      %p145 = scmp.eq.s32.totalorder %s27, 23
      %p146 = por %p144, %p145
      %p148 = scmp.ne.s32.totalorder %s131, %s147
      %p149 = scmp.eq.s32.totalorder %s27, 0
      %p150 = por %p148, %p149
      %p151 = scmp.le.s32.totalorder 1, %s21
      %p152 = scmp.lt.s32.totalorder %s21, 25
      %p153 = pnand %p151, %p152
      %p154 = pneg %p153
      // Predicated region
      $region9: #{tpu_custom_call.1} parent=5 // pred_check
        _
      $region10: #{tpu_custom_call.1} parent=5 // pred_check_branch
        %156 = sbr.rel (%p153) target = $region12
      $region11: #{tpu_custom_call.1} parent=5 // pred_region
        %s157 = ssub.s32 %s21, 1
        // Predicated region
        $region13: #{tpu_custom_call.1} parent=11 // pred_check
          %p158 = pneg %p96
        $region14: #{tpu_custom_call.1} parent=11 // pred_check_branch
          %160 = sbr.rel (%p158) target = $region16
        $region15: #{tpu_custom_call.1} parent=11 // pred_region
          _
        $region16: #{tpu_custom_call.1} parent=11 // pred_fallthru
          _
        // Predicated region
        $region17: #{tpu_custom_call.1} parent=11 // pred_check
          %p161 = pneg %p117
        $region18: #{tpu_custom_call.1} parent=11 // pred_check_branch
          %163 = sbr.rel (%p161) target = $region20
        $region19: #{tpu_custom_call.1} parent=11 // pred_region
          _
        $region20: #{tpu_custom_call.1} parent=11 // pred_fallthru
          _
      $region12: #{tpu_custom_call.1} parent=5 // pred_fallthru
        _
      %p164 = scmp.lt.s32.totalorder %s21, 24
      // Predicated region
      $region21: #{tpu_custom_call.1} parent=5 // pred_check
        %p165 = pneg %p164
      $region22: #{tpu_custom_call.1} parent=5 // pred_check_branch
        %167 = sbr.rel (%p165) target = $region24
      $region23: #{tpu_custom_call.1} parent=5 // pred_region
        // Predicated region
        $region25: #{tpu_custom_call.1} parent=23 // pred_check
          %p168 = pneg %p69
        $region26: #{tpu_custom_call.1} parent=23 // pred_check_branch
          %170 = sbr.rel (%p168) target = $region28
        $region27: #{tpu_custom_call.1} parent=23 // pred_region
          %s171 = sshra.s32 %s29, 7
          %s172 = sand.u32 %s29, 127
          %s173 = sadd.s32 %s171, %s28
          %s174 = smul.u32 %s173, 128
          %s175 = sshra.s32 %s29, 7
          %s176 = sand.u32 %s29, 127
          %s177 = sadd.s32 %s174, %s176
          %s178 = sld [smem:[#allocation4 + %s177]]
          %p179 = scmp.lt.s32.totalorder %s178, 63
          %s180 = scalar_select %p179, %s178, 63
          %s181 = scalar_lea.vmem %s1, %s180
          %s182 = sshra.s32 %s29, 7
          %s183 = sand.u32 %s29, 127
          %s184 = sadd.s32 %s182, %s28
          %s185 = smul.u32 %s184, 128
          %s186 = sshra.s32 %s29, 7
          %s187 = sand.u32 %s29, 127
          %s188 = sadd.s32 %s185, %s187
          %s189 = sld [smem:[#allocation4 + %s188]]
        $region28: #{tpu_custom_call.1} parent=23 // pred_fallthru
          _
      $region24: #{tpu_custom_call.1} parent=5 // pred_fallthru
        _
      %p190 = scmp.le.s32.totalorder 1, %s21
      %p191 = scmp.lt.s32.totalorder %s21, 25
      %p192 = pnand %p190, %p191
      %p193 = pneg %p192
      // Predicated region
      $region29: #{tpu_custom_call.1} parent=5 // pred_check
        _
      $region30: #{tpu_custom_call.1} parent=5 // pred_check_branch
        %195 = sbr.rel (%p192) target = $region32
      $region31: #{tpu_custom_call.1} parent=5 // pred_region
        %s196 = ssub.s32 %s21, 1
        %s197 = sshra.s32 %s31, 7
        %s198 = sand.u32 %s31, 127
        %s199 = sadd.s32 %s197, %s30
        %s200 = smul.u32 %s199, 128
        %s201 = sshra.s32 %s31, 7
        %s202 = sand.u32 %s31, 127
        %s203 = sadd.s32 %s200, %s202
        %s204 = sld [smem:[#allocation4 + %s203]]
        %p205 = scmp.lt.s32.totalorder %s204, 63
        %s206 = scalar_select %p205, %s204, 63
        %s207 = scalar_lea.vmem %s1, %s206
        %p208 = pneg %p75
        %p209 = pneg %p72
        %p210 = pneg %p96
        %p211 = pneg %p93
        %p212 = pneg %p117
        %p213 = pneg %p114
        %p214 = pneg %p143
        %p215 = pneg %p140
        %s216 = sand.u32 %s130, 1
        %s217 = scalar_lea.sflag [#allocation6], %s216
        %s218 = sand.u32 %s130, 1
        %s219 = scalar_lea.vmem [#allocation5], %s218
        %s220 = sshra.s32 %s31, 7
        %s221 = sand.u32 %s31, 127
        %s222 = sadd.s32 %s220, %s30
        %s223 = smul.u32 %s222, 128
        %s224 = sshra.s32 %s31, 7
        %s225 = sand.u32 %s31, 127
        %s226 = sadd.s32 %s223, %s225
        %s227 = sld [smem:[#allocation4 + %s226]]
        %p228 = scmp.lt.s32.totalorder %s227, 63
        %s229 = scalar_select %p228, %s227, 63
        %s230 = scalar_lea.vmem %s1, %s229
        %s231 = sshra.s32 %s31, 7
        %s232 = sand.u32 %s31, 127
        %s233 = sadd.s32 %s231, %s30
        %s234 = smul.u32 %s233, 128
        %s235 = sshra.s32 %s31, 7
        %s236 = sand.u32 %s31, 127
        %s237 = sadd.s32 %s234, %s236
        %s238 = sld [smem:[#allocation4 + %s237]]
        %p239 = scmp.eq.s32.totalorder %s31, 0
        // Predicated region
        $region33: #{tpu_custom_call.1} parent=31 // pred_check
          %p240 = pneg %p239
        $region34: #{tpu_custom_call.1} parent=31 // pred_check_branch
          %242 = sbr.rel (%p240) target = $region36
        $region35: #{tpu_custom_call.1} parent=31 // pred_region
          %vm243 = vcmask 253952
          %244 = vst.msk [vmem:[#allocation2] sm:$0x1] %vm243, 0.0
        $region36: #{tpu_custom_call.1} parent=31 // pred_fallthru
          _
        %v245 = vld [vmem:[#allocation2] sm:$0x1]
        %v246 = vld [vmem:[%s230] sm:$0x1]
        %v247 = vadd.f32 %v245, %v246
        %vm248 = vcmask 253952
        %249 = vst.msk [vmem:[#allocation2] sm:$0x1] %vm248, %v247
        %p250 = scmp.eq.s32.totalorder %s31, 5
        // Predicated region
        $region37: #{tpu_custom_call.1} parent=31 // pred_check
          %p251 = pneg %p250
        $region38: #{tpu_custom_call.1} parent=31 // pred_check_branch
          %253 = sbr.rel (%p251) target = $region40
        $region39: #{tpu_custom_call.1} parent=31 // pred_region
          %v254 = vld [vmem:[#allocation2] sm:$0x1]
          %v255 = vld [vmem:[%s2] sm:$0xff]
          %v256 = vld [vmem:[%s2 + $0x8] sm:$0xff]
          %v257 = vld [vmem:[%s2 + $0x10] sm:$0xff]
          %v258 = vld [vmem:[%s2 + $0x18] sm:$0xff]
          %v259 = vld [vmem:[%s2 + $0x20] sm:$0xff]
          %v260 = vld [vmem:[%s2 + $0x28] sm:$0xff]
          %v261 = vld [vmem:[%s2 + $0x30] sm:$0xff]
          %v262 = vld [vmem:[%s2 + $0x38] sm:$0xff]
          %v263 = vld [vmem:[%s2 + $0x40] sm:$0xff]
          %v264 = vld [vmem:[%s2 + $0x48] sm:$0xff]
          %v265 = vld [vmem:[%s2 + $0x50] sm:$0xff]
          %v266 = vld [vmem:[%s2 + $0x58] sm:$0xff]
          %v267 = vld [vmem:[%s2 + $0x60] sm:$0xff]
          %v268 = vld [vmem:[%s2 + $0x68] sm:$0xff]
          %v269 = vld [vmem:[%s2 + $0x70] sm:$0xff]
          %v270 = vld [vmem:[%s2 + $0x78] sm:$0xff]
          %v271 = vld [vmem:[%s3] sm:$0x1]
          %vm272 = vcmask 261120
          %v274 = vsel %vm272, %v254, 0
          %v277 = vsel %vm272, %v255, 0
          %v280 = vsel %vm272, %v256, 0
          %v283 = vsel %vm272, %v257, 0
          %v286 = vsel %vm272, %v258, 0
          %v289 = vsel %vm272, %v259, 0
          %v292 = vsel %vm272, %v260, 0
          %v295 = vsel %vm272, %v261, 0
          %v298 = vsel %vm272, %v262, 0
          %v301 = vsel %vm272, %v263, 0
          %v304 = vsel %vm272, %v264, 0
          %v307 = vsel %vm272, %v265, 0
          %v310 = vsel %vm272, %v266, 0
          %v313 = vsel %vm272, %v267, 0
          %v316 = vsel %vm272, %v268, 0
          %v319 = vsel %vm272, %v269, 0
          %v322 = vsel %vm272, %v270, 0
          %324 = vmatpush.xpose.msra.mxu0 %v322
          %325 = vmatpush.xpose.msra.mxu0 %v319
          %326 = vmatpush.xpose.msra.mxu0 %v316
          %327 = vmatpush.xpose.msra.mxu0 %v313
          %328 = vmatpush.xpose.msra.mxu0 %v310
          %329 = vmatpush.xpose.msra.mxu0 %v307
          %330 = vmatpush.xpose.msra.mxu0 %v304
          %331 = vmatpush.xpose.msra.mxu0 %v301
          %332 = vmatpush.xpose.msra.mxu0 %v298
          %333 = vmatpush.xpose.msra.mxu0 %v295
          %334 = vmatpush.xpose.msra.mxu0 %v292
          %335 = vmatpush.xpose.msra.mxu0 %v289
          %336 = vmatpush.xpose.msra.mxu0 %v286
          %337 = vmatpush.xpose.msra.mxu0 %v283
          %338 = vmatpush.xpose.msra.mxu0 %v280
          %339 = vmatpush.xpose.msra.mxu0 %v277
          %340 = vmatmul.f32.gmra.mxu0 %v274
          %v341 = vpop.f32.mrf.mxu0
          %v342 = vadd.f32 %v271, %v341
          %343 = vdwg.mxu0
          %vm344 = vcmask 1040384
          %v345 = vsel %vm344, %v342, -inf
          %346 = vmax.xlane.f32.xlu0 %v345
          %v347 = vpop.xlane.xlu0 %346
          %v348 = vsub.f32 %v342, %v347
          %v349 = vmul.f32 %v348, 1.442695
          %v350 = vpow.pop %v349
          %v351 = vsel %vm344, %v350, 0.0
          %352 = vadd.xlane.f32.xlu0 %v351
          %v353 = vpop.xlane.xlu0 %352
          %v354 = vlog2.pop %v353
          %v355 = vmul.f32 %v354, 0.6931472
          %v356 = vsub.f32 %v348, %v355
          %357 = vst [vmem:[%s219] sm:$0x1] %v356
        $region40: #{tpu_custom_call.1} parent=31 // pred_fallthru
          _
        %s358 = sand.u32 %s130, 1
        %s359 = scalar_lea.sflag [#allocation6], %s358
        %s360 = sand.u32 %s130, 1
        %s361 = scalar_lea.vmem [#allocation5], %s360
        // Predicated region
        $region41: #{tpu_custom_call.1} parent=31 // pred_check
          %p362 = pneg %p140
        $region42: #{tpu_custom_call.1} parent=31 // pred_check_branch
          %364 = sbr.rel (%p362) target = $region44
        $region43: #{tpu_custom_call.1} parent=31 // pred_region
          %366 = vsyncadd %s359, 0
          %s367 = scalar_lea.hbm %s4, %s30
          %s369 = sshll.u32 %s361, 4
          %s370 = int_to_ptr.vmem [resolvable:$true] %s369
          %s371 = sshll.u32 %s367, 4
          %s372 = int_to_ptr.hbm [resolvable:$true] %s371
          %374 = dma.vmem_to_hbm [thread:$0]  %s370, 16, %s372, %s359
        $region44: #{tpu_custom_call.1} parent=31 // pred_fallthru
          _
      $region32: #{tpu_custom_call.1} parent=5 // pred_fallthru
        _
      %p375 = scmp.le.s32.totalorder 2, %s21
      // Predicated region
      $region45: #{tpu_custom_call.1} parent=5 // pred_check
        %p376 = pneg %p375
      $region46: #{tpu_custom_call.1} parent=5 // pred_check_branch
        %378 = sbr.rel (%p376) target = $region48
      $region47: #{tpu_custom_call.1} parent=5 // pred_region
        %s379 = ssub.s32 %s21, 2
        // Predicated region
        $region49: #{tpu_custom_call.1} parent=47 // pred_check
          %p380 = pneg %p146
        $region50: #{tpu_custom_call.1} parent=47 // pred_check_branch
          %382 = sbr.rel (%p380) target = $region52
        $region51: #{tpu_custom_call.1} parent=47 // pred_region
          %s383 = sand.u32 %s131, 1
          %s384 = scalar_lea.sflag [#allocation6], %s383
          %s385 = sand.u32 %s131, 1
          %s386 = scalar_lea.vmem [#allocation5], %s385
          %388 = dma.done %s384, 16
        $region52: #{tpu_custom_call.1} parent=47 // pred_fallthru
          _
      $region48: #{tpu_custom_call.1} parent=5 // pred_fallthru
        _
    $region6: #{tpu_custom_call.1} parent=1 // loop_footer
      %s25 = sadd.s32 1, %s21
    $region7: #{tpu_custom_call.1} parent=1 // loop_footer_branch
      %20 = sbr.rel target = $region3
    $region8: #{tpu_custom_call.1} parent=1 // loop_exit
      _
    %389 = vsyncpa [#allocation6], 1
    %s390 = scalar_lea.sflag [#allocation6], 1
    %391 = vsyncpa %s390, 1

</llo_original>
